<compile_context>
chip_gen: v7x
topology: tpu7x:2x2x1
jax: 0.10.0
libtpu: 0.0.40
codegen_flags: <defaults>
</compile_context>

<pallas_src>
import jax
import jax.numpy as jnp
from jax.experimental import pallas as pl
from jax.experimental.pallas import tpu as pltpu


def _round_up(x, m):
    return ((x + m - 1) // m) * m


def _vmem_capacity_bytes():
    """Per-core VMEM capacity; conservative (v7x) fallback if query fails."""
    try:
        return int(pltpu.get_tpu_info().vmem_capacity_bytes)
    except Exception:
        return 64 << 20


def mlp_kernel(x1_ref, x2_ref, w1a_ref, w1b_ref, b1_ref, w2_ref, b2_ref, o_ref):
    cd = w1a_ref.dtype
    # Layer 1: concat([x1, x2]) @ w1 folded into two K=D MXU passes that
    # accumulate into the same f32 result (no concatenated buffer anywhere).
    h = jnp.dot(x1_ref[...].astype(cd), w1a_ref[...],
                preferred_element_type=jnp.float32)
    h = h + jnp.dot(x2_ref[...].astype(cd), w1b_ref[...],
                    preferred_element_type=jnp.float32)
    h = jnp.maximum(h + b1_ref[...].astype(jnp.float32), 0.0)   # bias + ReLU
    # dropout: identity in eval mode.
    # Layer 2: cast activations back to the operand dtype (bf16 when enabled),
    # accumulate in f32 on the MXU, add bias, store a lane-dense output tile.
    out = jnp.dot(h.astype(w2_ref.dtype), w2_ref[...],
                  preferred_element_type=jnp.float32) + b2_ref[...].astype(jnp.float32)
    o_ref[...] = out.astype(o_ref.dtype)


def prepare_mlp_params(w1, b1, w2, b2, compute_dtype=None):
    """Pad/cast the MLP parameters ONCE (hoisted out of the forward path).

    w1 : (2D, H)   first linear weight, stored (in_features, out_features)
    b1 : (H,)
    w2 : (H, O)
    b2 : (O,)
    compute_dtype : optional MXU operand dtype (e.g. jnp.bfloat16 — recommended
                    on v5e/v6e/v7x; accumulation stays f32).

    H and O are zero-padded to multiples of 128 so all weight/activation tiles
    are lane-dense.  Padded hidden columns are exactly zero (zero weights +
    zero bias + ReLU) and padded output columns are zero, so numerics match.
    w1 is pre-split into its x1 / x2 halves so the kernel never needs a concat.
    """
    twoD, H = w1.shape
    D = twoD // 2
    assert twoD == 2 * D and w2.shape[0] == H
    O = w2.shape[1]
    cd = jnp.dtype(compute_dtype) if compute_dtype is not None else jnp.dtype(w1.dtype)
    Hp = _round_up(H, 128)
    Op = _round_up(O, 128)
    w1a = jnp.zeros((D, Hp), cd).at[:, :H].set(w1[:D].astype(cd))
    w1b = jnp.zeros((D, Hp), cd).at[:, :H].set(w1[D:].astype(cd))
    b1p = jnp.zeros((1, Hp), cd).at[:, :H].set(b1.astype(cd)[None, :])
    w2p = jnp.zeros((Hp, Op), cd).at[:H, :O].set(w2.astype(cd))
    b2p = jnp.zeros((1, Op), cd).at[:, :O].set(b2.astype(cd)[None, :])
    return dict(w1a=w1a, w1b=w1b, b1=b1p, w2=w2p, b2=b2p,
                D=D, H=H, O=O, Hp=Hp, Op=Op, cd=cd)


def mlp_forward(x1, x2, params, *, batch_tile=256):
    """Fused MLP forward: w2 @ relu(cat(x1, x2) @ w1 + b1) + b2 (eval dropout).

    x1, x2 : (B, D) activations (any float dtype; cast to the operand dtype
             in-kernel, so no extra HBM pass is spent on casting).
    params : output of prepare_mlp_params().
    """
    D, H, O = params["D"], params["H"], params["O"]
    Hp, Op = params["Hp"], params["Op"]
    cd = params["cd"]
    w1a, w1b, b1p, w2p, b2p = (params["w1a"], params["w1b"], params["b1"],
                               params["w2"], params["b2"])

    B = x1.shape[0]
    assert x1.shape == (B, D) and x2.shape == (B, D)
    out_dtype = x1.dtype
    x_isz = jnp.dtype(x1.dtype).itemsize
    out_isz = jnp.dtype(out_dtype).itemsize
    cd_isz = jnp.dtype(cd).itemsize

    # Sublane-packing alignment for the streamed activation/output tiles
    # (f32 -> 8 rows, bf16 -> 16, int8/fp8 -> 32).
    align = {4: 8, 2: 16, 1: 32}.get(x_isz, 8)

    bt = max(align, min(int(batch_tile), _round_up(B, align)))
    bt = _round_up(bt, align)

    cap = _vmem_capacity_bytes()
    budget = int(cap * 0.85)

    def vmem_needed(bt_, to_, w2_bufs):
        resident = (2 * D * Hp + Hp) * cd_isz           # w1a + w1b + b1 (single buffer)
        layer2 = (Hp * to_ + to_) * cd_isz * w2_bufs    # w2 + b2 blocks
        acts = 2 * (2 * bt_ * D * x_isz)                # x1 + x2 tiles, double-buffered
        outs = 2 * (bt_ * to_ * out_isz)                # out tile, double-buffered
        hidden = bt_ * Hp * 4                           # f32 layer-1 intermediate
        return resident + layer2 + acts + outs + hidden + (2 << 20)  # headroom

    # Prefer the all-resident layout; if it would not fit (e.g. large H/O on
    # v7x's 64 MiB VMEM), tile the output dim and, if still needed, shrink the
    # batch tile.
    to, w2_bufs = Op, 1
    if vmem_needed(bt, to, w2_bufs) > budget:
        to, w2_bufs = 128, 2
        while vmem_needed(bt, to, w2_bufs) > budget and bt > align:
            bt = max(align, _round_up(bt // 2, align))
    # TODO(synk): for extreme H a further reduction-axis tiling over Hp (f32
    #             accumulator + pl.when init/finalize) would be needed.

    Bp = _round_up(B, bt)
    nb = Bp // bt
    no = Op // to

    if Bp != B:
        x1 = jnp.pad(x1, ((0, Bp - B), (0, 0)))
        x2 = jnp.pad(x2, ((0, Bp - B), (0, 0)))

    const_pm = pl.Buffered(1)                             # grid-invariant blocks
    w2_pm = pl.Buffered(1) if no == 1 else pl.Buffered(2)  # varies with j only if tiled

    vmem_limit = int(min(max(vmem_needed(bt, to, w2_bufs), 16 << 20), budget))

    flops = 2 * Bp * (2 * D * Hp) * no + 2 * Bp * Hp * Op
    bytes_accessed = (2 * Bp * D * x_isz) * no \
        + (w1a.size + w1b.size + b1p.size + w2p.size + b2p.size) * cd_isz \
        + Bp * Op * out_isz
    cost = pl.CostEstimate(flops=int(flops), transcendentals=0,
                           bytes_accessed=int(bytes_accessed))

    out = pl.pallas_call(
        mlp_kernel,
        out_shape=jax.ShapeDtypeStruct((Bp, Op), out_dtype),
        grid_spec=pltpu.PrefetchScalarGridSpec(
            num_scalar_prefetch=0,
            grid=(nb, no),
            in_specs=[
                pl.BlockSpec((bt, D), lambda i, j: (i, 0)),                          # x1 tile
                pl.BlockSpec((bt, D), lambda i, j: (i, 0)),                          # x2 tile
                pl.BlockSpec((D, Hp), lambda i, j: (0, 0), pipeline_mode=const_pm),  # w1[:D]
                pl.BlockSpec((D, Hp), lambda i, j: (0, 0), pipeline_mode=const_pm),  # w1[D:]
                pl.BlockSpec((1, Hp), lambda i, j: (0, 0), pipeline_mode=const_pm),  # b1
                pl.BlockSpec((Hp, to), lambda i, j: (0, j), pipeline_mode=w2_pm),    # w2
                pl.BlockSpec((1, to), lambda i, j: (0, j), pipeline_mode=w2_pm),     # b2
            ],
            out_specs=pl.BlockSpec((bt, to), lambda i, j: (i, j)),
        ),
        compiler_params=pltpu.CompilerParams(
            dimension_semantics=("parallel", "parallel"),
            vmem_limit_bytes=vmem_limit),
        cost_estimate=cost,
    )(x1, x2, w1a, w1b, b1p, w2p, b2p)

    return out[:B, :O]


def init_linear(key, in_features, out_features, dtype=jnp.float32):
    """nn.Linear-style init: U(-1/sqrt(fan_in), +1/sqrt(fan_in)).
    Weight returned as (in_features, out_features)."""
    kw, kb = jax.random.split(key)
    bound = 1.0 / (in_features ** 0.5)
    w = jax.random.uniform(kw, (in_features, out_features), dtype, -bound, bound)
    b = jax.random.uniform(kb, (out_features,), dtype, -bound, bound)
    return w, b


if __name__ == "__main__":
    # Small shapes consistent with the module: input_size=16 -> hidden=64 (4x), output=8.
    B = 16
    input_size = 16
    hidden_size = input_size * 4
    output_size = 8

    key = jax.random.PRNGKey(0)
    k_x1, k_x2, k_l1, k_l2 = jax.random.split(key, 4)

    x1 = jax.random.normal(k_x1, (B, input_size), jnp.float32)
    x2 = jax.random.normal(k_x2, (B, input_size), jnp.float32)
    w1, b1 = init_linear(k_l1, input_size * 2, hidden_size)   # w_1: Linear(2*D, H)
    w2, b2 = init_linear(k_l2, hidden_size, output_size)      # w_2: Linear(H, O)

    # Pure-JAX reference (eval-mode dropout == identity).
    x_cat = jnp.concatenate([x1, x2], axis=-1)
    ref = jnp.maximum(x_cat @ w1 + b1, 0.0) @ w2 + b2

    # f32 operand path (matches the reference tightly).
    params_f32 = prepare_mlp_params(w1, b1, w2, b2)
    out = jax.block_until_ready(mlp_forward(x1, x2, params_f32))
    assert out.shape == (B, output_size)
    assert jnp.allclose(out, ref, atol=1e-5, rtol=1e-5), "f32 mismatch vs reference"

    # bf16 operand path (f32 MXU accumulation) — recommended on v5e/v6e/v7x.
    params_bf16 = prepare_mlp_params(w1, b1, w2, b2, compute_dtype=jnp.bfloat16)
    out_bf16 = jax.block_until_ready(mlp_forward(x1, x2, params_bf16))
    assert out_bf16.shape == (B, output_size)
    assert jnp.allclose(out_bf16, ref, atol=1e-1, rtol=5e-2), "bf16 mismatch vs reference"

    # Ragged batch (exercises the zero-padded batch-tile path).
    out_r = jax.block_until_ready(mlp_forward(x1[:13], x2[:13], params_f32))
    assert out_r.shape == (13, output_size)
    assert jnp.allclose(out_r, ref[:13], atol=1e-5, rtol=1e-5), "ragged-batch mismatch"

    print("KERNEL_OK")
</pallas_src>

<mosaic_0001>
module attributes {stable_mosaic.version = 11 : i64} {
  func.func @mlp_kernel(%arg0: i32, %arg1: i32, %arg2: memref<16x16xf32, #tpu.memory_space<vmem>>, %arg3: memref<16x16xf32, #tpu.memory_space<vmem>>, %arg4: memref<16x128xf32, #tpu.memory_space<vmem>>, %arg5: memref<16x128xf32, #tpu.memory_space<vmem>>, %arg6: memref<1x128xf32, #tpu.memory_space<vmem>>, %arg7: memref<128x128xf32, #tpu.memory_space<vmem>>, %arg8: memref<1x128xf32, #tpu.memory_space<vmem>>, %arg9: memref<16x128xf32, #tpu.memory_space<vmem>>) attributes {dimension_semantics = [#tpu.dimension_semantics<parallel>, #tpu.dimension_semantics<parallel>], iteration_bounds = array<i64: 1, 1>, scalar_prefetch = 0 : i64, scratch_operands = 0 : i64, tpu.core_type = #tpu.core_type<tc>, window_params = [{transform_indices = @transform_0, window_bounds = array<i64: 16, 16>}, {transform_indices = @transform_1, window_bounds = array<i64: 16, 16>}, {pipeline_mode = #tpu.pipeline_mode<synchronous>, transform_indices = @transform_2, window_bounds = array<i64: 16, 128>}, {pipeline_mode = #tpu.pipeline_mode<synchronous>, transform_indices = @transform_3, window_bounds = array<i64: 16, 128>}, {pipeline_mode = #tpu.pipeline_mode<synchronous>, transform_indices = @transform_4, window_bounds = array<i64: 1, 128>}, {pipeline_mode = #tpu.pipeline_mode<synchronous>, transform_indices = @transform_5, window_bounds = array<i64: 128, 128>}, {pipeline_mode = #tpu.pipeline_mode<synchronous>, transform_indices = @transform_6, window_bounds = array<i64: 1, 128>}, {transform_indices = @transform_7, window_bounds = array<i64: 16, 128>}]} {
    %c0 = arith.constant 0 : index
    %c0_0 = arith.constant 0 : index
    %0 = vector.load %arg2[%c0, %c0_0] : memref<16x16xf32, #tpu.memory_space<vmem>>, vector<16x16xf32>
    %c0_1 = arith.constant 0 : index
    %c0_2 = arith.constant 0 : index
    %1 = vector.load %arg4[%c0_1, %c0_2] : memref<16x128xf32, #tpu.memory_space<vmem>>, vector<16x128xf32>
    %cst = arith.constant dense<0.000000e+00> : vector<16x128xf32>
    %2 = tpu.matmul %0, %1, %cst {dimension_numbers = #tpu.dot_dimension_numbers<[1], [0], [0], [1], [0, 0, 1, 1], [], []>} : vector<16x16xf32>, vector<16x128xf32>, vector<16x128xf32> -> vector<16x128xf32>
    %c0_3 = arith.constant 0 : index
    %c0_4 = arith.constant 0 : index
    %3 = vector.load %arg3[%c0_3, %c0_4] : memref<16x16xf32, #tpu.memory_space<vmem>>, vector<16x16xf32>
    %c0_5 = arith.constant 0 : index
    %c0_6 = arith.constant 0 : index
    %4 = vector.load %arg5[%c0_5, %c0_6] : memref<16x128xf32, #tpu.memory_space<vmem>>, vector<16x128xf32>
    %cst_7 = arith.constant dense<0.000000e+00> : vector<16x128xf32>
    %5 = tpu.matmul %3, %4, %cst_7 {dimension_numbers = #tpu.dot_dimension_numbers<[1], [0], [0], [1], [0, 0, 1, 1], [], []>} : vector<16x16xf32>, vector<16x128xf32>, vector<16x128xf32> -> vector<16x128xf32>
    %6 = arith.addf %2, %5 : vector<16x128xf32>
    %c0_8 = arith.constant 0 : index
    %c0_9 = arith.constant 0 : index
    %7 = vector.load %arg6[%c0_8, %c0_9] : memref<1x128xf32, #tpu.memory_space<vmem>>, vector<1x128xf32>
    %8 = vector.broadcast %7 : vector<1x128xf32> to vector<16x128xf32>
    %9 = arith.addf %6, %8 : vector<16x128xf32>
    %cst_10 = arith.constant 0.000000e+00 : f32
    %10 = vector.broadcast %cst_10 : f32 to vector<16x128xf32>
    %11 = arith.maximumf %9, %10 : vector<16x128xf32>
    %c0_11 = arith.constant 0 : index
    %c0_12 = arith.constant 0 : index
    %12 = vector.load %arg7[%c0_11, %c0_12] : memref<128x128xf32, #tpu.memory_space<vmem>>, vector<128x128xf32>
    %cst_13 = arith.constant dense<0.000000e+00> : vector<16x128xf32>
    %13 = tpu.matmul %11, %12, %cst_13 {dimension_numbers = #tpu.dot_dimension_numbers<[1], [0], [0], [1], [0, 0, 1, 1], [], []>} : vector<16x128xf32>, vector<128x128xf32>, vector<16x128xf32> -> vector<16x128xf32>
    %c0_14 = arith.constant 0 : index
    %c0_15 = arith.constant 0 : index
    %14 = vector.load %arg8[%c0_14, %c0_15] : memref<1x128xf32, #tpu.memory_space<vmem>>, vector<1x128xf32>
    %15 = vector.broadcast %14 : vector<1x128xf32> to vector<16x128xf32>
    %16 = arith.addf %13, %15 : vector<16x128xf32>
    %c0_16 = arith.constant 0 : index
    %c0_17 = arith.constant 0 : index
    %17 = vector.load %arg9[%c0_16, %c0_17] : memref<16x128xf32, #tpu.memory_space<vmem>>, vector<16x128xf32>
    tpu.vector_store %arg9[%c0_16, %c0_17], %16 {strides = array<i32>} : memref<16x128xf32, #tpu.memory_space<vmem>>, vector<16x128xf32>,
    return
  }
  func.func @transform_0(%arg0: i32, %arg1: i32) -> (i32, i32) {
    %c0_i32 = arith.constant 0 : i32
    %c0_i32_0 = arith.constant 0 : i32
    return %arg0, %c0_i32 : i32, i32
  }
  func.func @transform_1(%arg0: i32, %arg1: i32) -> (i32, i32) {
    %c0_i32 = arith.constant 0 : i32
    %c0_i32_0 = arith.constant 0 : i32
    return %arg0, %c0_i32 : i32, i32
  }
  func.func @transform_2(%arg0: i32, %arg1: i32) -> (i32, i32) {
    %c0_i32 = arith.constant 0 : i32
    %c0_i32_0 = arith.constant 0 : i32
    %c0_i32_1 = arith.constant 0 : i32
    return %c0_i32, %c0_i32_0 : i32, i32
  }
  func.func @transform_3(%arg0: i32, %arg1: i32) -> (i32, i32) {
    %c0_i32 = arith.constant 0 : i32
    %c0_i32_0 = arith.constant 0 : i32
    %c0_i32_1 = arith.constant 0 : i32
    return %c0_i32, %c0_i32_0 : i32, i32
  }
  func.func @transform_4(%arg0: i32, %arg1: i32) -> (i32, i32) {
    %c0_i32 = arith.constant 0 : i32
    %c0_i32_0 = arith.constant 0 : i32
    %c0_i32_1 = arith.constant 0 : i32
    return %c0_i32, %c0_i32_0 : i32, i32
  }
  func.func @transform_5(%arg0: i32, %arg1: i32) -> (i32, i32) {
    %c0_i32 = arith.constant 0 : i32
    %c0_i32_0 = arith.constant 0 : i32
    return %c0_i32, %arg1 : i32, i32
  }
  func.func @transform_6(%arg0: i32, %arg1: i32) -> (i32, i32) {
    %c0_i32 = arith.constant 0 : i32
    %c0_i32_0 = arith.constant 0 : i32
    return %c0_i32, %arg1 : i32, i32
  }
  func.func @transform_7(%arg0: i32, %arg1: i32) -> (i32, i32) {
    %c0_i32 = arith.constant 0 : i32
    return %arg0, %arg1 : i32, i32
  }
}

</mosaic_0001>

<llo_original>
// kernel: tpu_custom_call.1
$region0: #{tpu_custom_call.1}
  #allocation0 [shape = 'u32[]', space=smem, size = 0x4, offset = 0x4, fixed_abs, tag = 'smem constant byte address 0x4 - core index']
  #allocation1 [shape = 'u32[144,128]{1,0:T(1,128)}', space=vmem, size = 0x12000, scoped, tag = 'internal scratch']
  %s0 = inlined_call_operand.hbm [shape: f32[16,16], index: 0, kind: input, shape index: {}]
  %s1 = inlined_call_operand.hbm [shape: f32[16,16], index: 1, kind: input, shape index: {}]
  %s2 = inlined_call_operand.hbm [shape: f32[16,128], index: 2, kind: input, shape index: {}]
  %s3 = inlined_call_operand.hbm [shape: f32[16,128], index: 3, kind: input, shape index: {}]
  %s4 = inlined_call_operand.vmem [shape: f32[1,128], index: 4, kind: input, shape index: {}]
  %s5 = inlined_call_operand.hbm [shape: f32[128,128], index: 5, kind: input, shape index: {}]
  %s6 = inlined_call_operand.vmem [shape: f32[1,128], index: 6, kind: input, shape index: {}]
  %s7 = inlined_call_operand.hbm [shape: f32[16,128], index: 7, kind: output, shape index: {}]
  %s8 = sld [smem:[#allocation0]]
  $region58: #{tpu_custom_call.1} parent=0
    _
  %s10 = ssub.s32 1, %s8
  %s11 = scalar_select 0, %s10, %s8
  $region1: #{tpu_custom_call.1} parent=0
    #allocation2 [shape = 'u8[8192]{0}', space=vmem, size = 0x2000, scoped, tag = 'input window, operand 0, single buffered']
    #allocation3 [shape = 's32[1]{0}', space=sflag, size = 0x4, scoped, tag = 'scoped memory for tpu_custom_call.1']
    #allocation4 [shape = 's32[1]{0}', space=sflag, size = 0x4, scoped, tag = 'scoped memory for tpu_custom_call.1']
    #allocation5 [shape = 'u8[8192]{0}', space=vmem, size = 0x2000, scoped, tag = 'input window, operand 1, single buffered']
    #allocation6 [shape = 's32[1]{0}', space=sflag, size = 0x4, scoped, tag = 'scoped memory for tpu_custom_call.1']
    #allocation7 [shape = 'u8[8192]{0}', space=vmem, size = 0x2000, scoped, tag = 'input window, operand 2, single buffered']
    #allocation8 [shape = 'u8[8192]{0}', space=vmem, size = 0x2000, scoped, tag = 'input window, operand 3, single buffered']
    #allocation9 [shape = 's32[1]{0}', space=sflag, size = 0x4, scoped, tag = 'scoped memory for tpu_custom_call.1']
    #allocation10 [shape = 'u8[65536]{0}', space=vmem, size = 0x10000, scoped, tag = 'input window, operand 5, single buffered']
    #allocation11 [shape = 'u8[8192]{0}', space=vmem, size = 0x2000, scoped, tag = 'output window, operand 0, single buffered']
    %12 = vsyncpa [#allocation3], 0
    %13 = vsyncpa [#allocation6], 0
    %14 = vsyncpa [#allocation9], 0
    %15 = vsyncpa [#allocation4], 0
    // Predicated region
    $region2: #{tpu_custom_call.1} parent=1 // pred_check
      _
    $region3: #{tpu_custom_call.1} parent=1 // pred_check_branch
      %17 = sbr.rel (0) target = $region5
    $region4: #{tpu_custom_call.1} parent=1 // pred_region
      %s19 = ssub.s32 256, 256
      %20 = vsyncadd [#allocation3], %s19
      %s21 = sshll.u32 [#allocation2], 4
      %s22 = int_to_ptr.vmem [resolvable:$true] %s21
      %27 = dma.hbm_to_vmem [thread:$0]  %s0, 256, %s22, [#allocation3], 128, 128, 8
    $region5: #{tpu_custom_call.1} parent=1 // pred_fallthru
      _
    // Predicated region
    $region6: #{tpu_custom_call.1} parent=1 // pred_check
      _
    $region7: #{tpu_custom_call.1} parent=1 // pred_check_branch
      %29 = sbr.rel (0) target = $region9
    $region8: #{tpu_custom_call.1} parent=1 // pred_region
      %s31 = ssub.s32 256, 256
      %32 = vsyncadd [#allocation6], %s31
      %s33 = sshll.u32 [#allocation5], 4
      %s34 = int_to_ptr.vmem [resolvable:$true] %s33
      %39 = dma.hbm_to_vmem [thread:$0]  %s1, 256, %s34, [#allocation6], 128, 128, 8
    $region9: #{tpu_custom_call.1} parent=1 // pred_fallthru
      _
    // Predicated region
    $region10: #{tpu_custom_call.1} parent=1 // pred_check
      _
    $region11: #{tpu_custom_call.1} parent=1 // pred_check_branch
      %41 = sbr.rel (0) target = $region13
    $region12: #{tpu_custom_call.1} parent=1 // pred_region
      %s43 = ssub.s32 256, 256
      %44 = vsyncadd [#allocation6], %s43
      %s45 = sshll.u32 [#allocation7], 4
      %s46 = int_to_ptr.vmem [resolvable:$true] %s45
      %51 = dma.hbm_to_vmem [thread:$0]  %s2, 256, %s46, [#allocation6], 128, 128, 8
    $region13: #{tpu_custom_call.1} parent=1 // pred_fallthru
      _
    // Predicated region
    $region14: #{tpu_custom_call.1} parent=1 // pred_check
      _
    $region15: #{tpu_custom_call.1} parent=1 // pred_check_branch
      %53 = sbr.rel (0) target = $region17
    $region16: #{tpu_custom_call.1} parent=1 // pred_region
      %s55 = ssub.s32 256, 256
      %56 = vsyncadd [#allocation9], %s55
      %s57 = sshll.u32 [#allocation8], 4
      %s58 = int_to_ptr.vmem [resolvable:$true] %s57
      %63 = dma.hbm_to_vmem [thread:$0]  %s3, 256, %s58, [#allocation9], 128, 128, 8
    $region17: #{tpu_custom_call.1} parent=1 // pred_fallthru
      _
    // Predicated region
    $region18: #{tpu_custom_call.1} parent=1 // pred_check
      _
    $region19: #{tpu_custom_call.1} parent=1 // pred_check_branch
      %65 = sbr.rel (0) target = $region21
    $region20: #{tpu_custom_call.1} parent=1 // pred_region
      _
    $region21: #{tpu_custom_call.1} parent=1 // pred_fallthru
      _
    // Predicated region
    $region22: #{tpu_custom_call.1} parent=1 // pred_check
      _
    $region23: #{tpu_custom_call.1} parent=1 // pred_check_branch
      %67 = sbr.rel (0) target = $region25
    $region24: #{tpu_custom_call.1} parent=1 // pred_region
      %s69 = ssub.s32 2048, 2048
      %70 = vsyncadd [#allocation9], %s69
      %s71 = sshll.u32 [#allocation10], 4
      %s72 = int_to_ptr.vmem [resolvable:$true] %s71
      %77 = dma.hbm_to_vmem [thread:$0]  %s5, 2048, %s72, [#allocation9], 128, 128, 8
    $region25: #{tpu_custom_call.1} parent=1 // pred_fallthru
      _
    // Predicated region
    $region26: #{tpu_custom_call.1} parent=1 // pred_check
      _
    $region27: #{tpu_custom_call.1} parent=1 // pred_check_branch
      %79 = sbr.rel (0) target = $region29
    $region28: #{tpu_custom_call.1} parent=1 // pred_region
      _
    $region29: #{tpu_custom_call.1} parent=1 // pred_fallthru
      _
    // Predicated region
    $region30: #{tpu_custom_call.1} parent=1 // pred_check
      _
    $region31: #{tpu_custom_call.1} parent=1 // pred_check_branch
      %81 = sbr.rel (0) target = $region33
    $region32: #{tpu_custom_call.1} parent=1 // pred_region
      %82 = dma.done [#allocation3], 256
    $region33: #{tpu_custom_call.1} parent=1 // pred_fallthru
      _
    // Predicated region
    $region34: #{tpu_custom_call.1} parent=1 // pred_check
      _
    $region35: #{tpu_custom_call.1} parent=1 // pred_check_branch
      %84 = sbr.rel (0) target = $region37
    $region36: #{tpu_custom_call.1} parent=1 // pred_region
      %85 = dma.done [#allocation6], 256
    $region37: #{tpu_custom_call.1} parent=1 // pred_fallthru
      _
    // Predicated region
    $region38: #{tpu_custom_call.1} parent=1 // pred_check
      _
    $region39: #{tpu_custom_call.1} parent=1 // pred_check_branch
      %87 = sbr.rel (0) target = $region41
    $region40: #{tpu_custom_call.1} parent=1 // pred_region
      %88 = dma.done [#allocation6], 256
    $region41: #{tpu_custom_call.1} parent=1 // pred_fallthru
      _
    // Predicated region
    $region42: #{tpu_custom_call.1} parent=1 // pred_check
      _
    $region43: #{tpu_custom_call.1} parent=1 // pred_check_branch
      %90 = sbr.rel (0) target = $region45
    $region44: #{tpu_custom_call.1} parent=1 // pred_region
      %91 = dma.done [#allocation9], 256
    $region45: #{tpu_custom_call.1} parent=1 // pred_fallthru
      _
    // Predicated region
    $region46: #{tpu_custom_call.1} parent=1 // pred_check
      _
    $region47: #{tpu_custom_call.1} parent=1 // pred_check_branch
      %93 = sbr.rel (0) target = $region49
    $region48: #{tpu_custom_call.1} parent=1 // pred_region
      %94 = dma.done [#allocation9], 2048
    $region49: #{tpu_custom_call.1} parent=1 // pred_fallthru
      _
    %v95 = vld [vmem:[#allocation2] sm:$0xff]
    %v96 = vld [vmem:[#allocation2 + $0x8] sm:$0xff]
    %v97 = vld [vmem:[#allocation7] sm:$0xff]
    %v98 = vld [vmem:[#allocation7 + $0x8] sm:$0xff]
    %v99 = vld [vmem:[#allocation5] sm:$0xff]
    %v100 = vld [vmem:[#allocation5 + $0x8] sm:$0xff]
    %v101 = vld [vmem:[#allocation8] sm:$0xff]
    %v102 = vld [vmem:[#allocation8 + $0x8] sm:$0xff]
    %vm103 = vcmask 130048
    %v105 = vsel %vm103, %v99, 0
    %v108 = vsel %vm103, %v100, 0
    %110 = vmatprep.subr.mxu0 0.0
    %111 = vmatpush1.msra.mxu0 %v101
    %112 = vmatprep.subr.mxu0 0.0
    %113 = vmatpush1.msra.mxu0 %v102
    %114 = vmatprep.subr.mxu0 0.0
    %115 = vmatpush1.msra.mxu0 0.0
    %116 = vmatprep.subr.mxu0 0.0
    %117 = vmatpush1.msra.mxu0 0.0
    %118 = vmatprep.subr.mxu0 0.0
    %119 = vmatpush1.msra.mxu0 0.0
    %120 = vmatprep.subr.mxu0 0.0
    %121 = vmatpush1.msra.mxu0 0.0
    %122 = vmatprep.subr.mxu0 0.0
    %123 = vmatpush1.msra.mxu0 0.0
    %124 = vmatprep.subr.mxu0 0.0
    %125 = vmatpush1.msra.mxu0 0.0
    %126 = vmatprep.subr.mxu0 0.0
    %127 = vmatpush1.msra.mxu0 0.0
    %128 = vmatprep.subr.mxu0 0.0
    %129 = vmatpush1.msra.mxu0 0.0
    %130 = vmatprep.subr.mxu0 0.0
    %131 = vmatpush1.msra.mxu0 0.0
    %132 = vmatprep.subr.mxu0 0.0
    %133 = vmatpush1.msra.mxu0 0.0
    %134 = vmatprep.subr.mxu0 0.0
    %135 = vmatpush1.msra.mxu0 0.0
    %136 = vmatprep.subr.mxu0 0.0
    %137 = vmatpush1.msra.mxu0 0.0
    %138 = vmatprep.subr.mxu0 0.0
    %139 = vmatpush1.msra.mxu0 0.0
    %140 = vmatprep.subr.mxu0 0.0
    %141 = vmatpush1.msra.mxu0 0.0
    %142 = vmatprep.subr.mxu0 0.0
    %143 = vmatpush1.msra.mxu0 0.0
    %144 = vmatprep.subr.mxu0 0.0
    %145 = vmatpush1.msra.mxu0 0.0
    %146 = vmatprep.subr.mxu0 0.0
    %147 = vmatpush1.msra.mxu0 0.0
    %148 = vmatprep.subr.mxu0 0.0
    %149 = vmatpush1.msra.mxu0 0.0
    %150 = vmatprep.subr.mxu0 0.0
    %151 = vmatpush1.msra.mxu0 0.0
    %152 = vmatprep.subr.mxu0 0.0
    %153 = vmatpush1.msra.mxu0 0.0
    %154 = vmatprep.subr.mxu0 0.0
    %155 = vmatpush1.msra.mxu0 0.0
    %156 = vmatprep.subr.mxu0 0.0
    %157 = vmatpush1.msra.mxu0 0.0
    %158 = vmatprep.subr.mxu0 0.0
    %159 = vmatpush1.msra.mxu0 0.0
    %160 = vmatprep.subr.mxu0 0.0
    %161 = vmatpush1.msra.mxu0 0.0
    %162 = vmatprep.subr.mxu0 0.0
    %163 = vmatpush1.msra.mxu0 0.0
    %164 = vmatprep.subr.mxu0 0.0
    %165 = vmatpush1.msra.mxu0 0.0
    %166 = vmatprep.subr.mxu0 0.0
    %167 = vmatpush1.msra.mxu0 0.0
    %168 = vmatprep.subr.mxu0 0.0
    %169 = vmatpush1.msra.mxu0 0.0
    %170 = vmatprep.subr.mxu0 0.0
    %171 = vmatpush1.msra.mxu0 0.0
    %172 = vmatprep.subr.mxu0 0.0
    %173 = vmatpush1.msra.mxu0 0.0
    %174 = vmatprep.mubr.f32.mxu0 0.0
    %175 = vmatmul.mubr.f32.gmra.mrb[0].mxu0 %v105
    %v176 = vpop.f32.mrb[0].mxu0
    %v177 = vadd.f32 0.0, %v176
    %v178 = vpop.f32.mrb[0].mxu0
    %179 = vmatprep.mubr.f32.mxu0 0.0
    %180 = vmatmul.mubr.f32.gmra.mrb[0].mxu0 %v108
    %v181 = vpop.f32.mrb[0].mxu0
    %v182 = vadd.f32 0.0, %v181
    %v183 = vpop.f32.mrb[0].mxu0
    %184 = vdwg.mxu0
    %v186 = vsel %vm103, %v95, 0
    %v189 = vsel %vm103, %v96, 0
    %191 = vmatprep.subr.mxu0 0.0
    %192 = vmatpush1.msra.mxu0 %v97
    %193 = vmatprep.subr.mxu0 0.0
    %194 = vmatpush1.msra.mxu0 %v98
    %195 = vmatprep.subr.mxu0 0.0
    %196 = vmatpush1.msra.mxu0 0.0
    %197 = vmatprep.subr.mxu0 0.0
    %198 = vmatpush1.msra.mxu0 0.0
    %199 = vmatprep.subr.mxu0 0.0
    %200 = vmatpush1.msra.mxu0 0.0
    %201 = vmatprep.subr.mxu0 0.0
    %202 = vmatpush1.msra.mxu0 0.0
    %203 = vmatprep.subr.mxu0 0.0
    %204 = vmatpush1.msra.mxu0 0.0
    %205 = vmatprep.subr.mxu0 0.0
    %206 = vmatpush1.msra.mxu0 0.0
    %207 = vmatprep.subr.mxu0 0.0
    %208 = vmatpush1.msra.mxu0 0.0
    %209 = vmatprep.subr.mxu0 0.0
    %210 = vmatpush1.msra.mxu0 0.0
    %211 = vmatprep.subr.mxu0 0.0
    %212 = vmatpush1.msra.mxu0 0.0
    %213 = vmatprep.subr.mxu0 0.0
    %214 = vmatpush1.msra.mxu0 0.0
    %215 = vmatprep.subr.mxu0 0.0
    %216 = vmatpush1.msra.mxu0 0.0
    %217 = vmatprep.subr.mxu0 0.0
    %218 = vmatpush1.msra.mxu0 0.0
    %219 = vmatprep.subr.mxu0 0.0
    %220 = vmatpush1.msra.mxu0 0.0
    %221 = vmatprep.subr.mxu0 0.0
    %222 = vmatpush1.msra.mxu0 0.0
    %223 = vmatprep.subr.mxu0 0.0
    %224 = vmatpush1.msra.mxu0 0.0
    %225 = vmatprep.subr.mxu0 0.0
    %226 = vmatpush1.msra.mxu0 0.0
    %227 = vmatprep.subr.mxu0 0.0
    %228 = vmatpush1.msra.mxu0 0.0
    %229 = vmatprep.subr.mxu0 0.0
    %230 = vmatpush1.msra.mxu0 0.0
    %231 = vmatprep.subr.mxu0 0.0
    %232 = vmatpush1.msra.mxu0 0.0
    %233 = vmatprep.subr.mxu0 0.0
    %234 = vmatpush1.msra.mxu0 0.0
    %235 = vmatprep.subr.mxu0 0.0
    %236 = vmatpush1.msra.mxu0 0.0
    %237 = vmatprep.subr.mxu0 0.0
    %238 = vmatpush1.msra.mxu0 0.0
    %239 = vmatprep.subr.mxu0 0.0
    %240 = vmatpush1.msra.mxu0 0.0
    %241 = vmatprep.subr.mxu0 0.0
    %242 = vmatpush1.msra.mxu0 0.0
    %243 = vmatprep.subr.mxu0 0.0
    %244 = vmatpush1.msra.mxu0 0.0
    %245 = vmatprep.subr.mxu0 0.0
    %246 = vmatpush1.msra.mxu0 0.0
    %247 = vmatprep.subr.mxu0 0.0
    %248 = vmatpush1.msra.mxu0 0.0
    %249 = vmatprep.subr.mxu0 0.0
    %250 = vmatpush1.msra.mxu0 0.0
    %251 = vmatprep.subr.mxu0 0.0
    %252 = vmatpush1.msra.mxu0 0.0
    %253 = vmatprep.subr.mxu0 0.0
    %254 = vmatpush1.msra.mxu0 0.0
    %255 = vmatprep.mubr.f32.mxu0 0.0
    %256 = vmatmul.mubr.f32.gmra.mrb[0].mxu0 %v186
    %v257 = vpop.f32.mrb[0].mxu0
    %v258 = vadd.f32 %v177, %v257
    %v259 = vpop.f32.mrb[0].mxu0
    %260 = vmatprep.mubr.f32.mxu0 0.0
    %261 = vmatmul.mubr.f32.gmra.mrb[0].mxu0 %v189
    %v262 = vpop.f32.mrb[0].mxu0
    %v263 = vadd.f32 %v182, %v262
    %v264 = vpop.f32.mrb[0].mxu0
    %265 = vdwg.mxu0
    %v266 = vld [vmem:[%s4] sm:$0x1]
    %v268 = vlaneseq
    %v269 = vshrl.u32 %v268, 7
    %v270 = vsub.s32 0, %v269
    %v271 = vrot.slane %v266, %v270
    %v273 = vadd.f32 %v258, %v271
    %v274 = vadd.f32 %v263, %v271
    %v275 = vmax.f32 %v273, 0.0
    %v276 = vmax.f32 %v274, 0.0
    %v277 = vld [vmem:[#allocation10] sm:$0xff]
    %v278 = vld [vmem:[#allocation10 + $0x8] sm:$0xff]
    %v279 = vld [vmem:[#allocation10 + $0x10] sm:$0xff]
    %v280 = vld [vmem:[#allocation10 + $0x18] sm:$0xff]
    %v281 = vld [vmem:[#allocation10 + $0x20] sm:$0xff]
    %v282 = vld [vmem:[#allocation10 + $0x28] sm:$0xff]
    %v283 = vld [vmem:[#allocation10 + $0x30] sm:$0xff]
    %v284 = vld [vmem:[#allocation10 + $0x38] sm:$0xff]
    %v285 = vld [vmem:[#allocation10 + $0x40] sm:$0xff]
    %v286 = vld [vmem:[#allocation10 + $0x48] sm:$0xff]
    %v287 = vld [vmem:[#allocation10 + $0x50] sm:$0xff]
    %v288 = vld [vmem:[#allocation10 + $0x58] sm:$0xff]
    %v289 = vld [vmem:[#allocation10 + $0x60] sm:$0xff]
    %v290 = vld [vmem:[#allocation10 + $0x68] sm:$0xff]
    %v291 = vld [vmem:[#allocation10 + $0x70] sm:$0xff]
    %v292 = vld [vmem:[#allocation10 + $0x78] sm:$0xff]
    %v293 = vld [vmem:[%s6] sm:$0x1]
    %v295 = vlaneseq
    %v296 = vshrl.u32 %v295, 7
    %v297 = vsub.s32 0, %v296
    %v298 = vrot.slane %v293, %v297
    %300 = vmatprep.subr.mxu0 0.0
    %301 = vmatpush1.msra.mxu0 %v277
    %302 = vmatprep.subr.mxu0 0.0
    %303 = vmatpush1.msra.mxu0 %v278
    %304 = vmatprep.subr.mxu0 0.0
    %305 = vmatpush1.msra.mxu0 %v279
    %306 = vmatprep.subr.mxu0 0.0
    %307 = vmatpush1.msra.mxu0 %v280
    %308 = vmatprep.subr.mxu0 0.0
    %309 = vmatpush1.msra.mxu0 %v281
    %310 = vmatprep.subr.mxu0 0.0
    %311 = vmatpush1.msra.mxu0 %v282
    %312 = vmatprep.subr.mxu0 0.0
    %313 = vmatpush1.msra.mxu0 %v283
    %314 = vmatprep.subr.mxu0 0.0
    %315 = vmatpush1.msra.mxu0 %v284
    %316 = vmatprep.subr.mxu0 0.0
    %317 = vmatpush1.msra.mxu0 %v285
    %318 = vmatprep.subr.mxu0 0.0
    %319 = vmatpush1.msra.mxu0 %v286
    %320 = vmatprep.subr.mxu0 0.0
    %321 = vmatpush1.msra.mxu0 %v287
    %322 = vmatprep.subr.mxu0 0.0
    %323 = vmatpush1.msra.mxu0 %v288
    %324 = vmatprep.subr.mxu0 0.0
    %325 = vmatpush1.msra.mxu0 %v289
    %326 = vmatprep.subr.mxu0 0.0
    %327 = vmatpush1.msra.mxu0 %v290
    %328 = vmatprep.subr.mxu0 0.0
    %329 = vmatpush1.msra.mxu0 %v291
    %330 = vmatprep.subr.mxu0 0.0
    %331 = vmatpush1.msra.mxu0 %v292
    %332 = vmatprep.subr.mxu0 0.0
    %333 = vmatpush1.msra.mxu0 0.0
    %334 = vmatprep.subr.mxu0 0.0
    %335 = vmatpush1.msra.mxu0 0.0
    %336 = vmatprep.subr.mxu0 0.0
    %337 = vmatpush1.msra.mxu0 0.0
    %338 = vmatprep.subr.mxu0 0.0
    %339 = vmatpush1.msra.mxu0 0.0
    %340 = vmatprep.subr.mxu0 0.0
    %341 = vmatpush1.msra.mxu0 0.0
    %342 = vmatprep.subr.mxu0 0.0
    %343 = vmatpush1.msra.mxu0 0.0
    %344 = vmatprep.subr.mxu0 0.0
    %345 = vmatpush1.msra.mxu0 0.0
    %346 = vmatprep.subr.mxu0 0.0
    %347 = vmatpush1.msra.mxu0 0.0
    %348 = vmatprep.subr.mxu0 0.0
    %349 = vmatpush1.msra.mxu0 0.0
    %350 = vmatprep.subr.mxu0 0.0
    %351 = vmatpush1.msra.mxu0 0.0
    %352 = vmatprep.subr.mxu0 0.0
    %353 = vmatpush1.msra.mxu0 0.0
    %354 = vmatprep.subr.mxu0 0.0
    %355 = vmatpush1.msra.mxu0 0.0
    %356 = vmatprep.subr.mxu0 0.0
    %357 = vmatpush1.msra.mxu0 0.0
    %358 = vmatprep.subr.mxu0 0.0
    %359 = vmatpush1.msra.mxu0 0.0
    %360 = vmatprep.subr.mxu0 0.0
    %361 = vmatpush1.msra.mxu0 0.0
    %362 = vmatprep.subr.mxu0 0.0
    %363 = vmatpush1.msra.mxu0 0.0
    %364 = vmatprep.mubr.f32.mxu0 0.0
    %365 = vmatmul.mubr.f32.gmra.mrb[0].mxu0 %v275
    %v366 = vpop.f32.mrb[0].mxu0
    %v367 = vadd.f32 %v298, %v366
    %v368 = vpop.f32.mrb[0].mxu0
    %369 = vmatprep.mubr.f32.mxu0 0.0
    %370 = vmatmul.mubr.f32.gmra.mrb[0].mxu0 %v276
    %v371 = vpop.f32.mrb[0].mxu0
    %v372 = vadd.f32 %v298, %v371
    %v373 = vpop.f32.mrb[0].mxu0
    %374 = vdwg.mxu0
    %375 = vst [vmem:[#allocation11] sm:$0xff] %v367
    %376 = vst [vmem:[#allocation11 + $0x8] sm:$0xff] %v372
    // Predicated region
    $region50: #{tpu_custom_call.1} parent=1 // pred_check
      _
    $region51: #{tpu_custom_call.1} parent=1 // pred_check_branch
      %378 = sbr.rel (0) target = $region53
    $region52: #{tpu_custom_call.1} parent=1 // pred_region
      %s380 = ssub.s32 256, 256
      %381 = vsyncadd [#allocation4], %s380
      %s382 = sshll.u32 [#allocation11], 4
      %s383 = int_to_ptr.vmem [resolvable:$true] %s382
      %388 = dma.vmem_to_hbm [thread:$0]  %s383, 256, %s7, [#allocation4], 128, 128, 8
    $region53: #{tpu_custom_call.1} parent=1 // pred_fallthru
      _
    // Predicated region
    $region54: #{tpu_custom_call.1} parent=1 // pred_check
      _
    $region55: #{tpu_custom_call.1} parent=1 // pred_check_branch
      %390 = sbr.rel (0) target = $region57
    $region56: #{tpu_custom_call.1} parent=1 // pred_region
      %391 = dma.done [#allocation4], 256
    $region57: #{tpu_custom_call.1} parent=1 // pred_fallthru
      _
    %392 = vsyncpa [#allocation3], 1
    %393 = vsyncpa [#allocation6], 1
    %394 = vsyncpa [#allocation9], 1
    %395 = vsyncpa [#allocation4], 1

</llo_original>
